<compile_context>
chip_gen: v7x
topology: tpu7x:2x2x1
jax: 0.10.0
libtpu: 0.0.40
codegen_flags: <defaults>
</compile_context>

<pallas_src>
import jax
import jax.numpy as jnp
from jax import lax
from jax.experimental import pallas as pl
from jax.experimental.pallas import tpu as pltpu


# --------------------------------------------------------------------------- #
# Tile planning
# --------------------------------------------------------------------------- #
def _largest_divisor_leq(n, cap):
    cap = int(max(1, min(n, cap)))
    for d in range(cap, 0, -1):
        if n % d == 0:
            return d
    return 1


def _plan_tiles(N, L, per_lane_bytes, budget, *, max_lanes=8192,
                min_step_bytes=1 << 20, unroll_cap=8):
    """Pick (samples-per-step, lanes-per-step) for one pass."""
    per_lane_bytes = max(1, int(per_lane_bytes))
    by_budget = max(128, (budget // per_lane_bytes) // 128 * 128)

    if L < 128:
        tl = L                                    # full-dim tile (only legal choice)
    elif L <= max_lanes and L * per_lane_bytes <= budget:
        tl = L                                    # whole L per step: no ragged edge
    else:
        tl = min((L // 128) * 128, max_lanes, by_budget)   # lane multiple; edge masked

    # Batch several samples per grid step when each DMA slab would be small.
    bn = 1
    step_bytes = tl * per_lane_bytes
    if N > 1 and step_bytes < min_step_bytes:
        cap = min(unroll_cap,
                  -(-min_step_bytes // step_bytes),        # ceil
                  max(1, budget // step_bytes),
                  max(1, N // 2))                          # keep >=2 N-blocks (megacore)
        bn = _largest_divisor_leq(N, cap)
    return bn, tl


# --------------------------------------------------------------------------- #
# Kernels
# --------------------------------------------------------------------------- #
def _make_stats_kernel(bn, tl, lane, L):
    """Pass 1: y = PReLU(W @ x); accumulate per-channel sum / sum-of-squares."""
    ragged = (L % tl) != 0

    def kernel(alpha_ref, w_ref, x_ref, sum_ref, sq_ref):
        @pl.when(pl.program_id(1) == 0)
        def _init():
            sum_ref[...] = jnp.zeros_like(sum_ref)
            sq_ref[...] = jnp.zeros_like(sq_ref)

        w = w_ref[...]                     # (C_out, C_in)
        a = alpha_ref[...]                 # (C_out, 1) -- shared or per-channel PReLU
        s = sum_ref[0]                     # (C_out, lane) f32, VMEM-resident across L
        q = sq_ref[0]

        inb = None
        if ragged:
            # Edge tile along L: OOB lanes hold garbage -> mask before the stats.
            col = (lax.broadcasted_iota(jnp.int32, (w.shape[0], tl), 1)
                   + pl.program_id(1) * tl)
            inb = col < L

        for b in range(bn):                # static unroll over batched samples
            y = jnp.dot(w, x_ref[b], preferred_element_type=jnp.float32)
            y = jnp.where(y >= 0, y, a * y)            # PReLU
            if ragged:
                y = jnp.where(inb, y, 0.0)
            if lane == 1:
                s = s + jnp.sum(y, axis=1, keepdims=True)
                q = q + jnp.sum(y * y, axis=1, keepdims=True)
            else:
                for i in range(tl // lane):            # lane-wide VPU accumulation
                    blk = y[:, i * lane:(i + 1) * lane]
                    s = s + blk
                    q = q + blk * blk

        sum_ref[0] = s
        sq_ref[0] = q

    return kernel


def _make_apply_kernel(bn):
    """Pass 2: recompute PReLU(W @ x), apply folded BN affine, store NCL tile."""
    def kernel(alpha_ref, w_ref, scale_ref, shift_ref, x_ref, o_ref):
        w = w_ref[...]
        a = alpha_ref[...]
        scale = scale_ref[...]             # (C_out, 1)
        shift = shift_ref[...]
        for b in range(bn):
            y = jnp.dot(w, x_ref[b], preferred_element_type=jnp.float32)
            y = jnp.where(y >= 0, y, a * y)
            # Ragged edge lanes (if any) are dropped by the edge-block writeback.
            o_ref[b] = (y * scale + shift).astype(o_ref.dtype)
    return kernel


# --------------------------------------------------------------------------- #
# Wrapper
# --------------------------------------------------------------------------- #
def pointwise_conv_forward(x, weight, alpha, gamma, beta, *, eps=1e-5, out_dtype=None):
    """x: (N, C_in, L); weight: (C_out, C_in) or (C_out, C_in, 1);
    alpha: (1,) or (C_out,); gamma/beta: (C_out,)."""
    N, C_in, L = x.shape
    if weight.ndim == 3:                    # Conv1d weight (C_out, C_in, 1)
        weight = weight[:, :, 0]
    C_out = weight.shape[0]
    out_dtype = jnp.dtype(out_dtype) if out_dtype is not None else x.dtype

    alpha_c = jnp.broadcast_to(
        jnp.asarray(alpha, jnp.float32).reshape(-1, 1), (C_out, 1))

    # ---- generation-aware VMEM budget ---------------------------------------
    try:
        vmem_cap = int(pltpu.get_tpu_info().vmem_capacity_bytes)
    except Exception:
        vmem_cap = 64 * 1024 * 1024                       # conservative (v7x)
    vmem_limit = min(vmem_cap * 3 // 4, 96 * 1024 * 1024)  # ~48 MiB v7x / 96 MiB v5e,v6e
    tile_budget = vmem_limit * 2 // 3                       # headroom for w/pipeline scratch

    x_item = x.dtype.itemsize
    o_item = jnp.dtype(out_dtype).itemsize

    # pass 1 streams only x (stats are VMEM-resident); pass 2 also streams the output
    p1_per_lane = 2 * C_in * x_item + 2 * C_out * 4
    p2_per_lane = 2 * C_in * x_item + 2 * C_out * o_item + C_out * 4
    bn1, tl1 = _plan_tiles(N, L, p1_per_lane, tile_budget)
    bn2, tl2 = _plan_tiles(N, L, p2_per_lane, tile_budget)
    lane1 = 128 if tl1 % 128 == 0 else 1
    nb1, nl1 = N // bn1, pl.cdiv(L, tl1)
    nb2, nl2 = N // bn2, pl.cdiv(L, tl2)

    alpha_spec = pl.BlockSpec((C_out, 1), lambda n, l: (0, 0))
    w_spec = pl.BlockSpec((C_out, C_in), lambda n, l: (0, 0))

    flops = 2 * N * L * C_out * C_in
    x_bytes = int(x.size) * x_item
    w_bytes = int(weight.size) * weight.dtype.itemsize

    # ---- pass 1: per-N-block channel sums / sums-of-squares -----------------
    s_part, q_part = pl.pallas_call(
        _make_stats_kernel(bn1, tl1, lane1, L),
        grid=(nb1, nl1),
        in_specs=[alpha_spec, w_spec,
                  pl.BlockSpec((bn1, C_in, tl1), lambda n, l: (n, 0, l))],
        out_specs=[pl.BlockSpec((1, C_out, lane1), lambda n, l: (n, 0, 0))] * 2,
        out_shape=[jax.ShapeDtypeStruct((nb1, C_out, lane1), jnp.float32)] * 2,
        compiler_params=pltpu.CompilerParams(
            dimension_semantics=("parallel", "arbitrary"),
            vmem_limit_bytes=vmem_limit),
        cost_estimate=pl.CostEstimate(
            flops=flops, transcendentals=0,
            bytes_accessed=x_bytes + w_bytes + 2 * nb1 * C_out * lane1 * 4),
    )(alpha_c, weight, x)

    # ---- fold BatchNorm (training mode, biased variance) into one affine ----
    cnt = jnp.float32(N * L)                               # true element count
    mean = jnp.sum(s_part, axis=(0, 2)) / cnt
    var = jnp.maximum(jnp.sum(q_part, axis=(0, 2)) / cnt - mean * mean, 0.0)
    inv_std = lax.rsqrt(var + jnp.float32(eps))
    g = gamma.astype(jnp.float32) * inv_std
    scale = g.reshape(C_out, 1)
    shift = (beta.astype(jnp.float32) - mean * g).reshape(C_out, 1)

    # ---- pass 2: recompute + normalize, write (N, C_out, L) directly --------
    out = pl.pallas_call(
        _make_apply_kernel(bn2),
        grid=(nb2, nl2),
        in_specs=[alpha_spec, w_spec,
                  pl.BlockSpec((C_out, 1), lambda n, l: (0, 0)),
                  pl.BlockSpec((C_out, 1), lambda n, l: (0, 0)),
                  pl.BlockSpec((bn2, C_in, tl2), lambda n, l: (n, 0, l))],
        out_specs=pl.BlockSpec((bn2, C_out, tl2), lambda n, l: (n, 0, l)),
        out_shape=jax.ShapeDtypeStruct((N, C_out, L), out_dtype),
        compiler_params=pltpu.CompilerParams(
            dimension_semantics=("parallel", "parallel"),
            vmem_limit_bytes=vmem_limit),
        cost_estimate=pl.CostEstimate(
            flops=flops, transcendentals=0,
            bytes_accessed=x_bytes + w_bytes + N * C_out * L * o_item),
    )(alpha_c, weight, scale, shift, x)

    return out


# --------------------------------------------------------------------------- #
# Pure-JAX reference (PyTorch training-mode forward)
# --------------------------------------------------------------------------- #
def _reference(x, weight, alpha, gamma, beta, eps=1e-5):
    y = jnp.einsum("oc,ncl->nol", weight, x)
    a = jnp.asarray(alpha, jnp.float32).reshape(1, -1, 1)
    y = jnp.where(y >= 0, y, a * y)
    mean = jnp.mean(y, axis=(0, 2), keepdims=True)
    var = jnp.mean((y - mean) ** 2, axis=(0, 2), keepdims=True)
    y_hat = (y - mean) / jnp.sqrt(var + eps)
    return y_hat * gamma[None, :, None] + beta[None, :, None]


if __name__ == "__main__":
    key = jax.random.PRNGKey(0)
    k1, k2, k3, k4, k5, k6 = jax.random.split(key, 6)

    # Shapes implied by the module: batch=2, in_channels=4, out_channels=8, L=16.
    N, C_in, C_out, L = 2, 4, 8, 16
    x = jax.random.normal(k1, (N, C_in, L), dtype=jnp.float32)
    weight = jax.random.normal(k2, (C_out, C_in), dtype=jnp.float32) * 0.1
    alpha = jnp.full((1,), 0.25, dtype=jnp.float32)        # nn.PReLU() default
    gamma = jnp.ones((C_out,), dtype=jnp.float32)          # BatchNorm1d defaults
    beta = jnp.zeros((C_out,), dtype=jnp.float32)

    out = jax.block_until_ready(pointwise_conv_forward(x, weight, alpha, gamma, beta))
    ref = _reference(x, weight, alpha, gamma, beta)
    assert out.shape == (N, C_out, L)
    assert jnp.allclose(out, ref, atol=1e-4, rtol=1e-4)

    # Second check: C_out not a multiple of 8 (unpadded full-dim blocks),
    # L not a lane multiple (full-L tiles), multi-sample N blocking.
    N2, Ci2, Co2, L2 = 4, 8, 6, 200
    x2 = jax.random.normal(k3, (N2, Ci2, L2), dtype=jnp.float32)
    w2 = jax.random.normal(k4, (Co2, Ci2), dtype=jnp.float32) * 0.2
    g2 = 1.0 + 0.1 * jax.random.normal(k5, (Co2,), dtype=jnp.float32)
    b2 = 0.1 * jax.random.normal(k6, (Co2,), dtype=jnp.float32)
    a2 = jnp.full((1,), 0.25, dtype=jnp.float32)
    out2 = jax.block_until_ready(pointwise_conv_forward(x2, w2, a2, g2, b2))
    ref2 = _reference(x2, w2, a2, g2, b2)
    assert out2.shape == (N2, Co2, L2)
    assert jnp.allclose(out2, ref2, atol=1e-3, rtol=1e-3)

    print("KERNEL_OK")
</pallas_src>

<mosaic_0001>
module attributes {stable_mosaic.version = 11 : i64} {
  func.func @kernel(%arg0: i32, %arg1: i32, %arg2: memref<8x1xf32, #tpu.memory_space<vmem>>, %arg3: memref<8x4xf32, #tpu.memory_space<vmem>>, %arg4: memref<1x4x16xf32, #tpu.memory_space<vmem>>, %arg5: memref<1x8x1xf32, #tpu.memory_space<vmem>>, %arg6: memref<1x8x1xf32, #tpu.memory_space<vmem>>) attributes {dimension_semantics = [#tpu.dimension_semantics<parallel>, #tpu.dimension_semantics<arbitrary>], iteration_bounds = array<i64: 2, 1>, scalar_prefetch = 0 : i64, scratch_operands = 0 : i64, tpu.core_type = #tpu.core_type<tc>, window_params = [{pipeline_mode = #tpu.pipeline_mode<synchronous>, transform_indices = @transform_0, window_bounds = array<i64: 8, 1>}, {pipeline_mode = #tpu.pipeline_mode<synchronous>, transform_indices = @transform_1, window_bounds = array<i64: 8, 4>}, {transform_indices = @transform_2, window_bounds = array<i64: 1, 4, 16>}, {transform_indices = @transform_3, window_bounds = array<i64: 1, 8, 1>}, {transform_indices = @transform_4, window_bounds = array<i64: 1, 8, 1>}]} {
    %c0_i32 = arith.constant 0 : i32
    %0 = arith.cmpi eq, %arg1, %c0_i32 : i32
    %1 = arith.extui %0 : i1 to i32
    %c0_i32_0 = arith.constant 0 : i32
    %2 = arith.cmpi ne, %1, %c0_i32_0 : i32
    scf.if %2 {
      %cst_22 = arith.constant 0.000000e+00 : f32
      %30 = vector.broadcast %cst_22 : f32 to vector<1x8x1xf32>
      %c0_23 = arith.constant 0 : index
      %c0_24 = arith.constant 0 : index
      %c0_25 = arith.constant 0 : index
      %31 = vector.load %arg5[%c0_23, %c0_24, %c0_25] : memref<1x8x1xf32, #tpu.memory_space<vmem>>, vector<1x8x1xf32>
      tpu.vector_store %arg5[%c0_23, %c0_24, %c0_25], %30 {strides = array<i32>} : memref<1x8x1xf32, #tpu.memory_space<vmem>>, vector<1x8x1xf32>,
      %cst_26 = arith.constant 0.000000e+00 : f32
      %32 = vector.broadcast %cst_26 : f32 to vector<1x8x1xf32>
      %c0_27 = arith.constant 0 : index
      %c0_28 = arith.constant 0 : index
      %c0_29 = arith.constant 0 : index
      %33 = vector.load %arg6[%c0_27, %c0_28, %c0_29] : memref<1x8x1xf32, #tpu.memory_space<vmem>>, vector<1x8x1xf32>
      tpu.vector_store %arg6[%c0_27, %c0_28, %c0_29], %32 {strides = array<i32>} : memref<1x8x1xf32, #tpu.memory_space<vmem>>, vector<1x8x1xf32>,
    } else {
    }
    %c0 = arith.constant 0 : index
    %c0_1 = arith.constant 0 : index
    %3 = vector.load %arg3[%c0, %c0_1] : memref<8x4xf32, #tpu.memory_space<vmem>>, vector<8x4xf32>
    %c0_2 = arith.constant 0 : index
    %c0_3 = arith.constant 0 : index
    %4 = vector.load %arg2[%c0_2, %c0_3] : memref<8x1xf32, #tpu.memory_space<vmem>>, vector<8x1xf32>
    %c0_4 = arith.constant 0 : index
    %c0_5 = arith.constant 0 : index
    %c0_6 = arith.constant 0 : index
    %5 = vector.load %arg5[%c0_4, %c0_5, %c0_6] : memref<1x8x1xf32, #tpu.memory_space<vmem>>, vector<1x8x1xf32>
    %6 = vector.shape_cast %5 : vector<1x8x1xf32> to vector<8x1xf32>
    %c0_7 = arith.constant 0 : index
    %c0_8 = arith.constant 0 : index
    %c0_9 = arith.constant 0 : index
    %7 = vector.load %arg6[%c0_7, %c0_8, %c0_9] : memref<1x8x1xf32, #tpu.memory_space<vmem>>, vector<1x8x1xf32>
    %8 = vector.shape_cast %7 : vector<1x8x1xf32> to vector<8x1xf32>
    %c0_10 = arith.constant 0 : index
    %c0_11 = arith.constant 0 : index
    %c0_12 = arith.constant 0 : index
    %9 = vector.load %arg4[%c0_10, %c0_11, %c0_12] : memref<1x4x16xf32, #tpu.memory_space<vmem>>, vector<1x4x16xf32>
    %10 = vector.shape_cast %9 : vector<1x4x16xf32> to vector<4x16xf32>
    %cst = arith.constant dense<0.000000e+00> : vector<8x16xf32>
    %11 = tpu.matmul %3, %10, %cst {dimension_numbers = #tpu.dot_dimension_numbers<[1], [0], [0], [1], [0, 0, 1, 1], [], []>} : vector<8x4xf32>, vector<4x16xf32>, vector<8x16xf32> -> vector<8x16xf32>
    %cst_13 = arith.constant 0.000000e+00 : f32
    %12 = vector.broadcast %cst_13 : f32 to vector<8x16xf32>
    %13 = arith.cmpf oge, %11, %12 : vector<8x16xf32>
    %14 = vector.broadcast %4 : vector<8x1xf32> to vector<8x16xf32>
    %15 = arith.mulf %14, %11 : vector<8x16xf32>
    %16 = arith.select %13, %11, %15 : vector<8x16xi1>, vector<8x16xf32>
    %cst_14 = arith.constant dense<0.000000e+00> : vector<8xf32>
    %17 = vector.multi_reduction <add>, %16, %cst_14 [1] : vector<8x16xf32> to vector<8xf32>
    %18 = vector.shape_cast %17 : vector<8xf32> to vector<8x1xf32>
    %19 = arith.addf %6, %18 : vector<8x1xf32>
    %20 = arith.mulf %16, %16 : vector<8x16xf32>
    %cst_15 = arith.constant dense<0.000000e+00> : vector<8xf32>
    %21 = vector.multi_reduction <add>, %20, %cst_15 [1] : vector<8x16xf32> to vector<8xf32>
    %22 = vector.shape_cast %21 : vector<8xf32> to vector<8x1xf32>
    %23 = arith.addf %8, %22 : vector<8x1xf32>
    %c0_16 = arith.constant 0 : index
    %c0_17 = arith.constant 0 : index
    %c0_18 = arith.constant 0 : index
    %24 = vector.load %arg5[%c0_16, %c0_17, %c0_18] : memref<1x8x1xf32, #tpu.memory_space<vmem>>, vector<1x8x1xf32>
    %25 = vector.shape_cast %24 : vector<1x8x1xf32> to vector<8x1xf32>
    %26 = vector.shape_cast %19 : vector<8x1xf32> to vector<1x8x1xf32>
    tpu.vector_store %arg5[%c0_16, %c0_17, %c0_18], %26 {strides = array<i32>} : memref<1x8x1xf32, #tpu.memory_space<vmem>>, vector<1x8x1xf32>,
    %c0_19 = arith.constant 0 : index
    %c0_20 = arith.constant 0 : index
    %c0_21 = arith.constant 0 : index
    %27 = vector.load %arg6[%c0_19, %c0_20, %c0_21] : memref<1x8x1xf32, #tpu.memory_space<vmem>>, vector<1x8x1xf32>
    %28 = vector.shape_cast %27 : vector<1x8x1xf32> to vector<8x1xf32>
    %29 = vector.shape_cast %23 : vector<8x1xf32> to vector<1x8x1xf32>
    tpu.vector_store %arg6[%c0_19, %c0_20, %c0_21], %29 {strides = array<i32>} : memref<1x8x1xf32, #tpu.memory_space<vmem>>, vector<1x8x1xf32>,
    return
  }
  func.func @transform_0(%arg0: i32, %arg1: i32) -> (i32, i32) {
    %c0_i32 = arith.constant 0 : i32
    %c0_i32_0 = arith.constant 0 : i32
    %c0_i32_1 = arith.constant 0 : i32
    return %c0_i32, %c0_i32_0 : i32, i32
  }
  func.func @transform_1(%arg0: i32, %arg1: i32) -> (i32, i32) {
    %c0_i32 = arith.constant 0 : i32
    %c0_i32_0 = arith.constant 0 : i32
    %c0_i32_1 = arith.constant 0 : i32
    return %c0_i32, %c0_i32_0 : i32, i32
  }
  func.func @transform_2(%arg0: i32, %arg1: i32) -> (i32, i32, i32) {
    %c0_i32 = arith.constant 0 : i32
    %c0_i32_0 = arith.constant 0 : i32
    return %arg0, %c0_i32, %arg1 : i32, i32, i32
  }
  func.func @transform_3(%arg0: i32, %arg1: i32) -> (i32, i32, i32) {
    %c0_i32 = arith.constant 0 : i32
    %c0_i32_0 = arith.constant 0 : i32
    %c0_i32_1 = arith.constant 0 : i32
    return %arg0, %c0_i32, %c0_i32_0 : i32, i32, i32
  }
  func.func @transform_4(%arg0: i32, %arg1: i32) -> (i32, i32, i32) {
    %c0_i32 = arith.constant 0 : i32
    %c0_i32_0 = arith.constant 0 : i32
    %c0_i32_1 = arith.constant 0 : i32
    return %arg0, %c0_i32, %c0_i32_0 : i32, i32, i32
  }
}

</mosaic_0001>

<llo_original>
// kernel: tpu_custom_call.1
$region0: #{tpu_custom_call.1}
  #allocation0 [shape = 'u32[]', space=smem, size = 0x4, offset = 0x4, fixed_abs, tag = 'smem constant byte address 0x4 - core index']
  #allocation1 [shape = 'u32[144,128]{1,0:T(1,128)}', space=vmem, size = 0x12000, scoped, tag = 'internal scratch']
  %s0 = inlined_call_operand.vmem [shape: f32[8,1], index: 0, kind: input, shape index: {}]
  %s1 = inlined_call_operand.vmem [shape: f32[8,4], index: 1, kind: input, shape index: {}]
  %s2 = inlined_call_operand.vmem [shape: f32[2,4,16], index: 2, kind: input, shape index: {}]
  %s3 = inlined_call_operand.vmem [shape: f32[2,8,1], index: 3, kind: output, shape index: {0}]
  %s4 = inlined_call_operand.vmem [shape: f32[2,8,1], index: 4, kind: output, shape index: {1}]
  %5 = xla_tuple %s3, %s4
  %s6 = sld [smem:[#allocation0]]
  $region57: #{tpu_custom_call.1} parent=0
    _
  %s8 = ssub.s32 1, %s6
  %s9 = scalar_select 0, %s8, %s6
  loop: start=0, step=1, limit=4
  $region2: #{tpu_custom_call.1} parent=0 // loop_pre_header
    _
  $region3: #{tpu_custom_call.1} parent=0 // loop_header
    %s11 = sphi 0, %s15
    %p12 = scmp.ge.s32.totalorder %s11, 4
    %s18 = sphi 0, %s30
    %s19 = sphi 0, %s26
    %s20 = sphi 0, %s18
    %s21 = sphi 0, %s19
    %s22 = sphi 0, %s20
    %s23 = sphi 0, %s21
    %s31 = sphi 0, %s31
    %s33 = sphi 0, %s31
    %s34 = sphi 0, %s33
    %s48 = sphi 0, %s34
    %s52 = sphi 0, %s52
    %s54 = sphi 0, %s52
    %s55 = sphi 0, %s54
    %s69 = sphi 0, %s55
    %s77 = sphi 0, %s79
    %s80 = sphi 0, %s77
    %s81 = sphi 0, %s80
    %s97 = sphi 0, %s81
    %s103 = sphi 0, %s105
    %s106 = sphi 0, %s103
    %s107 = sphi 0, %s106
    %s123 = sphi 0, %s107
    %s129 = sphi 0, %s131
    %s132 = sphi 0, %s129
    %s133 = sphi 0, %s132
    %s149 = sphi 0, %s133
  $region4: #{tpu_custom_call.1} parent=0 // loop_header_branch
    %14 = sbr.rel (%p12) target = $region8
  $region5: #{tpu_custom_call.1} parent=0 // loop_body
    %s16 = ssub.s32 %s11, 1
    %s17 = ssub.s32 %s11, 2
    %s24 = sadd.s32 1, %s19
    %p25 = scmp.ge.s32.totalorder %s24, 1
    %s26 = scalar_select %p25, 0, %s24
    %s27 = sadd.s32 1, %s18
    %s28 = scalar_select %p25, %s27, %s18
    %p29 = scmp.ge.s32.totalorder %s28, 2
    %s30 = scalar_select %p29, 0, %s28
    %s32 = sadd.s32 %s31, 1
    %p35 = scmp.eq.s32.totalorder %s11, 1
    %p36 = scmp.ne.s32.totalorder %s31, %s33
    %p37 = scmp.eq.s32.totalorder %s11, 0
    %p38 = por %p36, %p37
    %p39 = scmp.ne.s32.totalorder %s31, %s33
    %p40 = scmp.eq.s32.totalorder %s16, 1
    %p41 = por %p39, %p40
    %p42 = scmp.ne.s32.totalorder %s33, %s34
    %p43 = scmp.eq.s32.totalorder %s16, 0
    %p44 = por %p42, %p43
    %p45 = scmp.ne.s32.totalorder %s33, %s34
    %p46 = scmp.eq.s32.totalorder %s17, 1
    %p47 = por %p45, %p46
    %p49 = scmp.ne.s32.totalorder %s34, %s48
    %p50 = scmp.eq.s32.totalorder %s17, 0
    %p51 = por %p49, %p50
    %s53 = sadd.s32 %s52, 1
    %p56 = scmp.eq.s32.totalorder %s11, 1
    %p57 = scmp.ne.s32.totalorder %s52, %s54
    %p58 = scmp.eq.s32.totalorder %s11, 0
    %p59 = por %p57, %p58
    %p60 = scmp.ne.s32.totalorder %s52, %s54
    %p61 = scmp.eq.s32.totalorder %s16, 1
    %p62 = por %p60, %p61
    %p63 = scmp.ne.s32.totalorder %s54, %s55
    %p64 = scmp.eq.s32.totalorder %s16, 0
    %p65 = por %p63, %p64
    %p66 = scmp.ne.s32.totalorder %s54, %s55
    %p67 = scmp.eq.s32.totalorder %s17, 1
    %p68 = por %p66, %p67
    %p70 = scmp.ne.s32.totalorder %s55, %s69
    %p71 = scmp.eq.s32.totalorder %s17, 0
    %p72 = por %p70, %p71
    %s73 = ssub.s32 %s18, %s30
    %s74 = ssub.s32 %s19, %s26
    %s75 = sor.u32 %s73, %s74
    %p76 = scmp.eq.s32.totalorder %s75, 0
    %s78 = sadd.s32 %s77, 1
    %s79 = scalar_select %p76, %s77, %s78
    %p82 = pneg %p76
    %p83 = scmp.eq.s32.totalorder %s11, 1
    %p84 = por %p82, %p83
    %p85 = scmp.ne.s32.totalorder %s77, %s80
    %p86 = scmp.eq.s32.totalorder %s11, 0
    %p87 = por %p85, %p86
    %p88 = scmp.ne.s32.totalorder %s77, %s80
    %p89 = scmp.eq.s32.totalorder %s16, 1
    %p90 = por %p88, %p89
    %p91 = scmp.ne.s32.totalorder %s80, %s81
    %p92 = scmp.eq.s32.totalorder %s16, 0
    %p93 = por %p91, %p92
    %p94 = scmp.ne.s32.totalorder %s80, %s81
    %p95 = scmp.eq.s32.totalorder %s17, 1
    %p96 = por %p94, %p95
    %p98 = scmp.ne.s32.totalorder %s81, %s97
    %p99 = scmp.eq.s32.totalorder %s17, 0
    %p100 = por %p98, %p99
    %s101 = ssub.s32 %s18, %s30
    %p102 = scmp.eq.s32.totalorder %s101, 0
    %s104 = sadd.s32 %s103, 1
    %s105 = scalar_select %p102, %s103, %s104
    %p108 = pneg %p102
    %p109 = scmp.eq.s32.totalorder %s11, 1
    %p110 = por %p108, %p109
    %p111 = scmp.ne.s32.totalorder %s103, %s106
    %p112 = scmp.eq.s32.totalorder %s11, 0
    %p113 = por %p111, %p112
    %p114 = scmp.ne.s32.totalorder %s103, %s106
    %p115 = scmp.eq.s32.totalorder %s16, 1
    %p116 = por %p114, %p115
    %p117 = scmp.ne.s32.totalorder %s106, %s107
    %p118 = scmp.eq.s32.totalorder %s16, 0
    %p119 = por %p117, %p118
    %p120 = scmp.ne.s32.totalorder %s106, %s107
    %p121 = scmp.eq.s32.totalorder %s17, 1
    %p122 = por %p120, %p121
    %p124 = scmp.ne.s32.totalorder %s107, %s123
    %p125 = scmp.eq.s32.totalorder %s17, 0
    %p126 = por %p124, %p125
    %s127 = ssub.s32 %s18, %s30
    %p128 = scmp.eq.s32.totalorder %s127, 0
    %s130 = sadd.s32 %s129, 1
    %s131 = scalar_select %p128, %s129, %s130
    %p134 = pneg %p128
    %p135 = scmp.eq.s32.totalorder %s11, 1
    %p136 = por %p134, %p135
    %p137 = scmp.ne.s32.totalorder %s129, %s132
    %p138 = scmp.eq.s32.totalorder %s11, 0
    %p139 = por %p137, %p138
    %p140 = scmp.ne.s32.totalorder %s129, %s132
    %p141 = scmp.eq.s32.totalorder %s16, 1
    %p142 = por %p140, %p141
    %p143 = scmp.ne.s32.totalorder %s132, %s133
    %p144 = scmp.eq.s32.totalorder %s16, 0
    %p145 = por %p143, %p144
    %p146 = scmp.ne.s32.totalorder %s132, %s133
    %p147 = scmp.eq.s32.totalorder %s17, 1
    %p148 = por %p146, %p147
    %p150 = scmp.ne.s32.totalorder %s133, %s149
    %p151 = scmp.eq.s32.totalorder %s17, 0
    %p152 = por %p150, %p151
    %p153 = scmp.le.s32.totalorder 1, %s11
    %p154 = scmp.lt.s32.totalorder %s11, 3
    %p155 = pnand %p153, %p154
    %p156 = pneg %p155
    // Predicated region
    $region9: #{tpu_custom_call.1} parent=5 // pred_check
      _
    $region10: #{tpu_custom_call.1} parent=5 // pred_check_branch
      %158 = sbr.rel (%p155) target = $region12
    $region11: #{tpu_custom_call.1} parent=5 // pred_region
      %s159 = ssub.s32 %s11, 1
      // Predicated region
      $region13: #{tpu_custom_call.1} parent=11 // pred_check
        %p160 = pneg %p44
      $region14: #{tpu_custom_call.1} parent=11 // pred_check_branch
        %162 = sbr.rel (%p160) target = $region16
      $region15: #{tpu_custom_call.1} parent=11 // pred_region
        _
      $region16: #{tpu_custom_call.1} parent=11 // pred_fallthru
        _
      // Predicated region
      $region17: #{tpu_custom_call.1} parent=11 // pred_check
        %p163 = pneg %p65
      $region18: #{tpu_custom_call.1} parent=11 // pred_check_branch
        %165 = sbr.rel (%p163) target = $region20
      $region19: #{tpu_custom_call.1} parent=11 // pred_region
        _
      $region20: #{tpu_custom_call.1} parent=11 // pred_fallthru
        _
    $region12: #{tpu_custom_call.1} parent=5 // pred_fallthru
      _
    %p166 = scmp.lt.s32.totalorder %s11, 2
    // Predicated region
    $region21: #{tpu_custom_call.1} parent=5 // pred_check
      %p167 = pneg %p166
    $region22: #{tpu_custom_call.1} parent=5 // pred_check_branch
      %169 = sbr.rel (%p167) target = $region24
    $region23: #{tpu_custom_call.1} parent=5 // pred_region
      // Predicated region
      $region25: #{tpu_custom_call.1} parent=23 // pred_check
        %p170 = pneg %p87
      $region26: #{tpu_custom_call.1} parent=23 // pred_check_branch
        %172 = sbr.rel (%p170) target = $region28
      $region27: #{tpu_custom_call.1} parent=23 // pred_region
        %p173 = scmp.lt.s32.totalorder %s18, 1
        %s174 = scalar_select %p173, %s18, 1
        %p175 = scmp.lt.s32.totalorder %s19, 0
        %s176 = scalar_select %p175, %s19, 0
        %s177 = sadd.s32 %s176, %s174
        %s178 = smul.addr %s177, 4
        %s179 = scalar_lea.vmem %s2, %s178
      $region28: #{tpu_custom_call.1} parent=23 // pred_fallthru
        _
    $region24: #{tpu_custom_call.1} parent=5 // pred_fallthru
      _
    %p180 = scmp.le.s32.totalorder 1, %s11
    %p181 = scmp.lt.s32.totalorder %s11, 3
    %p182 = pnand %p180, %p181
    %p183 = pneg %p182
    // Predicated region
    $region29: #{tpu_custom_call.1} parent=5 // pred_check
      _
    $region30: #{tpu_custom_call.1} parent=5 // pred_check_branch
      %185 = sbr.rel (%p182) target = $region32
    $region31: #{tpu_custom_call.1} parent=5 // pred_region
      %s186 = ssub.s32 %s11, 1
      %p187 = pneg %p44
      %p188 = pneg %p41
      %p189 = pneg %p65
      %p190 = pneg %p62
      %p191 = scmp.lt.s32.totalorder %s20, 1
      %s192 = scalar_select %p191, %s20, 1
      %p193 = scmp.lt.s32.totalorder %s21, 0
      %s194 = scalar_select %p193, %s21, 0
      %s195 = sadd.s32 %s194, %s192
      %s196 = smul.addr %s195, 4
      %s197 = scalar_lea.vmem %s2, %s196
      %p198 = pneg %p93
      %p199 = pneg %p90
      %p200 = pneg %p119
      %p201 = pneg %p116
      %p202 = scmp.lt.s32.totalorder %s20, 1
      %s203 = scalar_select %p202, %s20, 1
      %s204 = smul.addr %s203, 8
      %s205 = scalar_lea.vmem %s3, %s204
      %p206 = pneg %p145
      %p207 = pneg %p142
      %p208 = scmp.lt.s32.totalorder %s20, 1
      %s209 = scalar_select %p208, %s20, 1
      %s210 = smul.addr %s209, 8
      %s211 = scalar_lea.vmem %s4, %s210
      %p212 = scmp.lt.s32.totalorder %s20, 1
      %s213 = scalar_select %p212, %s20, 1
      %p214 = scmp.lt.s32.totalorder %s21, 0
      %s215 = scalar_select %p214, %s21, 0
      %s216 = sadd.s32 %s215, %s213
      %s217 = smul.addr %s216, 4
      %s218 = scalar_lea.vmem %s2, %s217
      %p219 = scmp.lt.s32.totalorder %s20, 1
      %s220 = scalar_select %p219, %s20, 1
      %s221 = smul.addr %s220, 8
      %s222 = scalar_lea.vmem %s3, %s221
      %p223 = scmp.lt.s32.totalorder %s20, 1
      %s224 = scalar_select %p223, %s20, 1
      %s225 = smul.addr %s224, 8
      %s226 = scalar_lea.vmem %s4, %s225
      %p227 = scmp.eq.s32.totalorder %s21, 0
      // Predicated region
      $region33: #{tpu_custom_call.1} parent=31 // pred_check
        %p228 = pneg %p227
      $region34: #{tpu_custom_call.1} parent=31 // pred_check_branch
        %230 = sbr.rel (%p228) target = $region36
      $region35: #{tpu_custom_call.1} parent=31 // pred_region
        %vm231 = vcmask 7168
        %232 = vst.msk [vmem:[%s222] sm:$0xff] %vm231, 0.0
        %233 = vst.msk [vmem:[%s226] sm:$0xff] %vm231, 0.0
      $region36: #{tpu_custom_call.1} parent=31 // pred_fallthru
        _
      %v234 = vld [vmem:[%s1] sm:$0xff]
      %v235 = vld [vmem:[%s0] sm:$0xff]
      %v236 = vld [vmem:[%s222] sm:$0xff]
      %v237 = vld [vmem:[%s226] sm:$0xff]
      %v238 = vld [vmem:[%s218] sm:$0xf]
      %vm239 = vcmask 31744
      %v241 = vsel %vm239, %v234, 0
      %vm243 = vcmask 1043456
      %v245 = vsel %vm243, %v238, 0
      %247 = vmatprep.subr.mxu0 0.0
      %248 = vmatpush1.msra.mxu0 %v245
      %249 = vmatprep.subr.mxu0 0.0
      %250 = vmatpush1.msra.mxu0 0.0
      %251 = vmatprep.subr.mxu0 0.0
      %252 = vmatpush1.msra.mxu0 0.0
      %253 = vmatprep.subr.mxu0 0.0
      %254 = vmatpush1.msra.mxu0 0.0
      %255 = vmatprep.subr.mxu0 0.0
      %256 = vmatpush1.msra.mxu0 0.0
      %257 = vmatprep.subr.mxu0 0.0
      %258 = vmatpush1.msra.mxu0 0.0
      %259 = vmatprep.subr.mxu0 0.0
      %260 = vmatpush1.msra.mxu0 0.0
      %261 = vmatprep.subr.mxu0 0.0
      %262 = vmatpush1.msra.mxu0 0.0
      %263 = vmatprep.subr.mxu0 0.0
      %264 = vmatpush1.msra.mxu0 0.0
      %265 = vmatprep.subr.mxu0 0.0
      %266 = vmatpush1.msra.mxu0 0.0
      %267 = vmatprep.subr.mxu0 0.0
      %268 = vmatpush1.msra.mxu0 0.0
      %269 = vmatprep.subr.mxu0 0.0
      %270 = vmatpush1.msra.mxu0 0.0
      %271 = vmatprep.subr.mxu0 0.0
      %272 = vmatpush1.msra.mxu0 0.0
      %273 = vmatprep.subr.mxu0 0.0
      %274 = vmatpush1.msra.mxu0 0.0
      %275 = vmatprep.subr.mxu0 0.0
      %276 = vmatpush1.msra.mxu0 0.0
      %277 = vmatprep.subr.mxu0 0.0
      %278 = vmatpush1.msra.mxu0 0.0
      %279 = vmatprep.subr.mxu0 0.0
      %280 = vmatpush1.msra.mxu0 0.0
      %281 = vmatprep.subr.mxu0 0.0
      %282 = vmatpush1.msra.mxu0 0.0
      %283 = vmatprep.subr.mxu0 0.0
      %284 = vmatpush1.msra.mxu0 0.0
      %285 = vmatprep.subr.mxu0 0.0
      %286 = vmatpush1.msra.mxu0 0.0
      %287 = vmatprep.subr.mxu0 0.0
      %288 = vmatpush1.msra.mxu0 0.0
      %289 = vmatprep.subr.mxu0 0.0
      %290 = vmatpush1.msra.mxu0 0.0
      %291 = vmatprep.subr.mxu0 0.0
      %292 = vmatpush1.msra.mxu0 0.0
      %293 = vmatprep.subr.mxu0 0.0
      %294 = vmatpush1.msra.mxu0 0.0
      %295 = vmatprep.subr.mxu0 0.0
      %296 = vmatpush1.msra.mxu0 0.0
      %297 = vmatprep.subr.mxu0 0.0
      %298 = vmatpush1.msra.mxu0 0.0
      %299 = vmatprep.subr.mxu0 0.0
      %300 = vmatpush1.msra.mxu0 0.0
      %301 = vmatprep.subr.mxu0 0.0
      %302 = vmatpush1.msra.mxu0 0.0
      %303 = vmatprep.subr.mxu0 0.0
      %304 = vmatpush1.msra.mxu0 0.0
      %305 = vmatprep.subr.mxu0 0.0
      %306 = vmatpush1.msra.mxu0 0.0
      %307 = vmatprep.subr.mxu0 0.0
      %308 = vmatpush1.msra.mxu0 0.0
      %309 = vmatprep.subr.mxu0 0.0
      %310 = vmatpush1.msra.mxu0 0.0
      %311 = vmatprep.mubr.f32.mxu0 0.0
      %312 = vmatmul.mubr.f32.gmra.mrb[0].mxu0 %v241
      %v313 = vpop.f32.mrb[0].mxu0
      %v314 = vadd.f32 0.0, %v313
      %v315 = vpop.f32.mrb[0].mxu0
      %316 = vdwg.mxu0
      %vm317 = vcmp.ge.f32.partialorder %v314, 0.0
      %319 = vset.pattern.permute.xlu0 0
      %320 = vperm.xlu0 %319, %v235
      %v321 = vpop.permute.xlu0 %320
      %v323 = vmul.f32 %v321, %v314
      %v324 = vsel %vm317, %v314, %v323
      %vm325 = vcmask 130048
      %v326 = vsel %vm325, %v324, 0.0
      %327 = vadd.xlane.f32.xlu0 %v326
      %v328 = vpop.xlane.xlu0 %327
      %v329 = vadd.f32 %v236, %v328
      %v330 = vmul.f32 %v324, %v324
      %v331 = vsel %vm325, %v330, 0.0
      %332 = vadd.xlane.f32.xlu0 %v331
      %v333 = vpop.xlane.xlu0 %332
      %v334 = vadd.f32 %v237, %v333
      %vm335 = vcmask 7168
      %336 = vst.msk [vmem:[%s222] sm:$0xff] %vm335, %v329
      %337 = vst.msk [vmem:[%s226] sm:$0xff] %vm335, %v334
      %p338 = scmp.lt.s32.totalorder %s20, 1
      %s339 = scalar_select %p338, %s20, 1
      %s340 = smul.addr %s339, 8
      %s341 = scalar_lea.vmem %s3, %s340
      %p342 = scmp.lt.s32.totalorder %s20, 1
      %s343 = scalar_select %p342, %s20, 1
      %s344 = smul.addr %s343, 8
      %s345 = scalar_lea.vmem %s4, %s344
      // Predicated region
      $region37: #{tpu_custom_call.1} parent=31 // pred_check
        %p346 = pneg %p116
      $region38: #{tpu_custom_call.1} parent=31 // pred_check_branch
        %348 = sbr.rel (%p346) target = $region40
      $region39: #{tpu_custom_call.1} parent=31 // pred_region
        _
      $region40: #{tpu_custom_call.1} parent=31 // pred_fallthru
        _
      // Predicated region
      $region41: #{tpu_custom_call.1} parent=31 // pred_check
        %p349 = pneg %p142
      $region42: #{tpu_custom_call.1} parent=31 // pred_check_branch
        %351 = sbr.rel (%p349) target = $region44
      $region43: #{tpu_custom_call.1} parent=31 // pred_region
        _
      $region44: #{tpu_custom_call.1} parent=31 // pred_fallthru
        _
    $region32: #{tpu_custom_call.1} parent=5 // pred_fallthru
      _
    %p352 = scmp.le.s32.totalorder 2, %s11
    // Predicated region
    $region45: #{tpu_custom_call.1} parent=5 // pred_check
      %p353 = pneg %p352
    $region46: #{tpu_custom_call.1} parent=5 // pred_check_branch
      %355 = sbr.rel (%p353) target = $region48
    $region47: #{tpu_custom_call.1} parent=5 // pred_region
      %s356 = ssub.s32 %s11, 2
      // Predicated region
      $region49: #{tpu_custom_call.1} parent=47 // pred_check
        %p357 = pneg %p122
      $region50: #{tpu_custom_call.1} parent=47 // pred_check_branch
        %359 = sbr.rel (%p357) target = $region52
      $region51: #{tpu_custom_call.1} parent=47 // pred_region
        %p360 = scmp.lt.s32.totalorder %s22, 1
        %s361 = scalar_select %p360, %s22, 1
        %s362 = smul.addr %s361, 8
        %s363 = scalar_lea.vmem %s3, %s362
      $region52: #{tpu_custom_call.1} parent=47 // pred_fallthru
        _
      // Predicated region
      $region53: #{tpu_custom_call.1} parent=47 // pred_check
        %p364 = pneg %p148
      $region54: #{tpu_custom_call.1} parent=47 // pred_check_branch
        %366 = sbr.rel (%p364) target = $region56
      $region55: #{tpu_custom_call.1} parent=47 // pred_region
        %p367 = scmp.lt.s32.totalorder %s22, 1
        %s368 = scalar_select %p367, %s22, 1
        %s369 = smul.addr %s368, 8
        %s370 = scalar_lea.vmem %s4, %s369
      $region56: #{tpu_custom_call.1} parent=47 // pred_fallthru
        _
    $region48: #{tpu_custom_call.1} parent=5 // pred_fallthru
      _
  $region6: #{tpu_custom_call.1} parent=0 // loop_footer
    %s15 = sadd.s32 1, %s11
  $region7: #{tpu_custom_call.1} parent=0 // loop_footer_branch
    %10 = sbr.rel target = $region3
  $region8: #{tpu_custom_call.1} parent=0 // loop_exit
    _

</llo_original>
